<compile_context>
chip_gen: v5e
topology: v5e:2x2
jax: 0.10.0
libtpu: 0.0.40
codegen_flags: <defaults>
</compile_context>

<pallas_src>
import jax
import jax.numpy as jnp
from jax.experimental import pallas as pl
from jax.experimental.pallas import tpu as pltpu


def _round_up(x, m):
    return ((x + m - 1) // m) * m


def _network_embedding_kernel(xc_ref, w1_ref, b1_ref, w2_ref, b2_ref,
                              we_ref, be_ref, out_ref):
    """out = relu(relu(relu(xc @ W1 + b1) @ W2 + b2) @ We + be)."""
    h1 = jnp.dot(xc_ref[...], w1_ref[...], preferred_element_type=jnp.float32)
    h1 = jnp.maximum(h1 + b1_ref[...], 0.0)               # dropout = identity (eval)
    h2 = jnp.dot(h1.astype(w2_ref.dtype), w2_ref[...],
                 preferred_element_type=jnp.float32)
    h2 = jnp.maximum(h2 + b2_ref[...], 0.0)               # dropout = identity (eval)
    e = jnp.dot(h2.astype(we_ref.dtype), we_ref[...],
                preferred_element_type=jnp.float32)
    out_ref[...] = jnp.maximum(e + be_ref[...], 0.0)


def _pack_params(params, compute_dtype):
    """Fold the two branches into block-diagonal weights; pad emb to 128 lanes."""
    (w1s, b1s, w2s, b2s, w1n, b1n, w2n, b2n, wes, wen, be) = params
    n_input, h0 = w1s.shape
    h1d = w2s.shape[1]
    n_emb = be.shape[-1]
    n_out_pad = _round_up(n_emb, 128)

    z1 = jnp.zeros((n_input, h0), w1s.dtype)
    W1 = jnp.concatenate(
        [jnp.concatenate([w1s, z1], axis=1),
         jnp.concatenate([z1, w1n], axis=1)], axis=0)        # (2*n_input, 2*h0)
    z2 = jnp.zeros((h0, h1d), w2s.dtype)
    W2 = jnp.concatenate(
        [jnp.concatenate([w2s, z2], axis=1),
         jnp.concatenate([z2, w2n], axis=1)], axis=0)        # (2*h0, 2*h1)
    We = jnp.concatenate([wes, wen], axis=0)                 # (2*h1, n_emb)
    We = jnp.pad(We, ((0, 0), (0, n_out_pad - n_emb)))       # lane-dense output

    b1 = jnp.concatenate([b1s, b1n], axis=1).astype(jnp.float32)
    b2 = jnp.concatenate([b2s, b2n], axis=1).astype(jnp.float32)
    be_p = jnp.pad(be, ((0, 0), (0, n_out_pad - n_emb))).astype(jnp.float32)

    packed = (W1.astype(compute_dtype), b1,
              W2.astype(compute_dtype), b2,
              We.astype(compute_dtype), be_p)
    return packed, n_emb, n_out_pad


def network_embedding_forward(x, x_nei, params, *, batch_tile=512,
                              compute_dtype=jnp.bfloat16):
    B, n_input = x.shape
    (W1, b1, W2, b2, We, be_p), n_emb, n_out_pad = _pack_params(params, compute_dtype)
    d_in = W1.shape[0]                                       # 2 * n_input

    # cat(x, x_nei) along features; cast once to the MXU dtype.
    xc = jnp.concatenate([x, x_nei], axis=1).astype(compute_dtype)

    # Large batch tile; for small B the whole batch is a single block.
    bt = min(_round_up(batch_tile, 8), _round_up(B, 8))
    grid_len = pl.cdiv(B, bt)
    B_pad = grid_len * bt
    if B_pad != B:
        xc = jnp.pad(xc, ((0, B_pad - B), (0, 0)))

    weight_args = (W1, b1, W2, b2, We, be_p)

    flops = 2 * B_pad * (W1.shape[0] * W1.shape[1]
                         + W2.shape[0] * W2.shape[1]
                         + We.shape[0] * We.shape[1])
    bytes_accessed = int(xc.size * xc.dtype.itemsize
                         + sum(w.size * w.dtype.itemsize for w in weight_args)
                         + B_pad * n_out_pad * 4)

    out = pl.pallas_call(
        _network_embedding_kernel,
        out_shape=jax.ShapeDtypeStruct((B_pad, n_out_pad), jnp.float32),
        grid_spec=pl.GridSpec(
            grid=(grid_len,),
            in_specs=[pl.BlockSpec((bt, d_in), lambda i: (i, 0))]
                     + [pl.BlockSpec(w.shape, lambda i: (0, 0))
                        for w in weight_args],
            out_specs=pl.BlockSpec((bt, n_out_pad), lambda i: (i, 0)),
        ),
        compiler_params=pltpu.CompilerParams(
            dimension_semantics=("parallel",),
        ),
        cost_estimate=pl.CostEstimate(flops=flops, transcendentals=0,
                                      bytes_accessed=bytes_accessed),
    )(xc, *weight_args)

    return out[:B, :n_emb]


def init_params(key, n_input, n_hidden, n_emb):
    """Deterministic init matching the PyTorch module (trunc_normal weights, 0.1 bias).
    Weights are stored as [in, out] (transposed vs. torch.nn.Linear)."""
    h0, h1 = n_hidden
    keys = jax.random.split(key, 5)

    def trunc(k, shape, std):
        # trunc_normal_(std=std, a=-2*std, b=2*std)
        return std * jax.random.truncated_normal(k, -2.0, 2.0, shape, jnp.float32)

    std1 = 1.0 / (n_input / 2.0) ** 0.5
    std2 = 1.0 / (h0 / 2.0) ** 0.5
    std3 = 1.0 / (h1 * 2.0) ** 0.5

    w1s = trunc(keys[0], (n_input, h0), std1)
    w2s = trunc(keys[1], (h0, h1), std2)
    w1n = trunc(keys[2], (n_input, h0), std1)
    w2n = trunc(keys[3], (h0, h1), std2)
    we = trunc(keys[4], (2 * h1, n_emb), std3)
    wes, wen = we[:h1], we[h1:]

    b1s = jnp.full((1, h0), 0.1, jnp.float32)
    b2s = jnp.full((1, h1), 0.1, jnp.float32)
    b1n = jnp.full((1, h0), 0.1, jnp.float32)
    b2n = jnp.full((1, h1), 0.1, jnp.float32)
    be = jnp.full((1, n_emb), 0.1, jnp.float32)

    return (w1s, b1s, w2s, b2s, w1n, b1n, w2n, b2n, wes, wen, be)


def reference_forward_f32(x, x_nei, params):
    """Pure-f32 jnp reference matching the PyTorch forward (dropout = identity)."""
    (w1s, b1s, w2s, b2s, w1n, b1n, w2n, b2n, wes, wen, be) = params
    h2s = jax.nn.relu(jax.nn.relu(x @ w1s + b1s) @ w2s + b2s)
    h2n = jax.nn.relu(jax.nn.relu(x_nei @ w1n + b1n) @ w2n + b2n)
    return jax.nn.relu(h2s @ wes + h2n @ wen + be)


def reference_forward_packed(x, x_nei, params, compute_dtype=jnp.bfloat16):
    """Precision-matched reference: same packing / casts as the kernel, plain jnp."""
    (W1, b1, W2, b2, We, be_p), n_emb, _ = _pack_params(params, compute_dtype)
    xc = jnp.concatenate([x, x_nei], axis=1).astype(compute_dtype)
    h1 = jax.nn.relu(jnp.dot(xc, W1, preferred_element_type=jnp.float32) + b1)
    h2 = jax.nn.relu(jnp.dot(h1.astype(compute_dtype), W2,
                             preferred_element_type=jnp.float32) + b2)
    e = jax.nn.relu(jnp.dot(h2.astype(compute_dtype), We,
                            preferred_element_type=jnp.float32) + be_p)
    return e[:, :n_emb]


if __name__ == "__main__":
    B, n_input = 16, 32
    n_hidden = (64, 32)
    n_emb = 16

    key = jax.random.PRNGKey(0)
    kx, kn, kp = jax.random.split(key, 3)
    x = jax.random.normal(kx, (B, n_input), jnp.float32)
    x_nei = jax.random.normal(kn, (B, n_input), jnp.float32)
    params = init_params(kp, n_input, n_hidden, n_emb)

    out = network_embedding_forward(x, x_nei, params)
    out = jax.block_until_ready(out)
    assert out.shape == (B, n_emb)

    # Tight check vs precision-matched (bf16-cast) reference.
    ref_matched = reference_forward_packed(x, x_nei, params)
    assert jnp.allclose(out, ref_matched, atol=2e-3, rtol=2e-3), \
        "mismatch vs bf16-matched reference"

    # Loose sanity check vs the pure-f32 PyTorch-equivalent forward
    # (bounds the bf16 quantization error).
    ref_f32 = reference_forward_f32(x, x_nei, params)
    assert float(jnp.max(jnp.abs(out - ref_f32))) < 0.25, \
        "bf16 quantization error too large vs f32 reference"

    print("KERNEL_OK")
</pallas_src>

<mosaic_0001>
module attributes {stable_mosaic.version = 11 : i64} {
  func.func @_network_embedding_kernel(%arg0: i32, %arg1: memref<16x64xbf16, #tpu.memory_space<vmem>>, %arg2: memref<64x128xbf16, #tpu.memory_space<vmem>>, %arg3: memref<1x128xf32, #tpu.memory_space<vmem>>, %arg4: memref<128x64xbf16, #tpu.memory_space<vmem>>, %arg5: memref<1x64xf32, #tpu.memory_space<vmem>>, %arg6: memref<64x128xbf16, #tpu.memory_space<vmem>>, %arg7: memref<1x128xf32, #tpu.memory_space<vmem>>, %arg8: memref<16x128xf32, #tpu.memory_space<vmem>>) attributes {dimension_semantics = [#tpu.dimension_semantics<parallel>], iteration_bounds = array<i64: 1>, scalar_prefetch = 0 : i64, scratch_operands = 0 : i64, tpu.core_type = #tpu.core_type<tc>, window_params = [{transform_indices = @transform_0, window_bounds = array<i64: 16, 64>}, {pipeline_mode = #tpu.pipeline_mode<synchronous>, transform_indices = @transform_1, window_bounds = array<i64: 64, 128>}, {pipeline_mode = #tpu.pipeline_mode<synchronous>, transform_indices = @transform_2, window_bounds = array<i64: 1, 128>}, {pipeline_mode = #tpu.pipeline_mode<synchronous>, transform_indices = @transform_3, window_bounds = array<i64: 128, 64>}, {pipeline_mode = #tpu.pipeline_mode<synchronous>, transform_indices = @transform_4, window_bounds = array<i64: 1, 64>}, {pipeline_mode = #tpu.pipeline_mode<synchronous>, transform_indices = @transform_5, window_bounds = array<i64: 64, 128>}, {pipeline_mode = #tpu.pipeline_mode<synchronous>, transform_indices = @transform_6, window_bounds = array<i64: 1, 128>}, {transform_indices = @transform_7, window_bounds = array<i64: 16, 128>}]} {
    %c0 = arith.constant 0 : index
    %c0_0 = arith.constant 0 : index
    %0 = vector.load %arg1[%c0, %c0_0] : memref<16x64xbf16, #tpu.memory_space<vmem>>, vector<16x64xbf16>
    %c0_1 = arith.constant 0 : index
    %c0_2 = arith.constant 0 : index
    %1 = vector.load %arg2[%c0_1, %c0_2] : memref<64x128xbf16, #tpu.memory_space<vmem>>, vector<64x128xbf16>
    %cst = arith.constant dense<0.000000e+00> : vector<16x128xf32>
    %2 = tpu.matmul %0, %1, %cst {dimension_numbers = #tpu.dot_dimension_numbers<[1], [0], [0], [1], [0, 0, 1, 1], [], []>} : vector<16x64xbf16>, vector<64x128xbf16>, vector<16x128xf32> -> vector<16x128xf32>
    %c0_3 = arith.constant 0 : index
    %c0_4 = arith.constant 0 : index
    %3 = vector.load %arg3[%c0_3, %c0_4] : memref<1x128xf32, #tpu.memory_space<vmem>>, vector<1x128xf32>
    %4 = vector.broadcast %3 : vector<1x128xf32> to vector<16x128xf32>
    %5 = arith.addf %2, %4 : vector<16x128xf32>
    %cst_5 = arith.constant 0.000000e+00 : f32
    %6 = vector.broadcast %cst_5 : f32 to vector<16x128xf32>
    %7 = arith.maximumf %5, %6 : vector<16x128xf32>
    %8 = arith.truncf %7 : vector<16x128xf32> to vector<16x128xbf16>
    %c0_6 = arith.constant 0 : index
    %c0_7 = arith.constant 0 : index
    %9 = vector.load %arg4[%c0_6, %c0_7] : memref<128x64xbf16, #tpu.memory_space<vmem>>, vector<128x64xbf16>
    %cst_8 = arith.constant dense<0.000000e+00> : vector<16x64xf32>
    %10 = tpu.matmul %8, %9, %cst_8 {dimension_numbers = #tpu.dot_dimension_numbers<[1], [0], [0], [1], [0, 0, 1, 1], [], []>} : vector<16x128xbf16>, vector<128x64xbf16>, vector<16x64xf32> -> vector<16x64xf32>
    %c0_9 = arith.constant 0 : index
    %c0_10 = arith.constant 0 : index
    %11 = vector.load %arg5[%c0_9, %c0_10] : memref<1x64xf32, #tpu.memory_space<vmem>>, vector<1x64xf32>
    %12 = vector.broadcast %11 : vector<1x64xf32> to vector<16x64xf32>
    %13 = arith.addf %10, %12 : vector<16x64xf32>
    %cst_11 = arith.constant 0.000000e+00 : f32
    %14 = vector.broadcast %cst_11 : f32 to vector<16x64xf32>
    %15 = arith.maximumf %13, %14 : vector<16x64xf32>
    %16 = arith.truncf %15 : vector<16x64xf32> to vector<16x64xbf16>
    %c0_12 = arith.constant 0 : index
    %c0_13 = arith.constant 0 : index
    %17 = vector.load %arg6[%c0_12, %c0_13] : memref<64x128xbf16, #tpu.memory_space<vmem>>, vector<64x128xbf16>
    %cst_14 = arith.constant dense<0.000000e+00> : vector<16x128xf32>
    %18 = tpu.matmul %16, %17, %cst_14 {dimension_numbers = #tpu.dot_dimension_numbers<[1], [0], [0], [1], [0, 0, 1, 1], [], []>} : vector<16x64xbf16>, vector<64x128xbf16>, vector<16x128xf32> -> vector<16x128xf32>
    %c0_15 = arith.constant 0 : index
    %c0_16 = arith.constant 0 : index
    %19 = vector.load %arg7[%c0_15, %c0_16] : memref<1x128xf32, #tpu.memory_space<vmem>>, vector<1x128xf32>
    %20 = vector.broadcast %19 : vector<1x128xf32> to vector<16x128xf32>
    %21 = arith.addf %18, %20 : vector<16x128xf32>
    %cst_17 = arith.constant 0.000000e+00 : f32
    %22 = vector.broadcast %cst_17 : f32 to vector<16x128xf32>
    %23 = arith.maximumf %21, %22 : vector<16x128xf32>
    %c0_18 = arith.constant 0 : index
    %c0_19 = arith.constant 0 : index
    %24 = vector.load %arg8[%c0_18, %c0_19] : memref<16x128xf32, #tpu.memory_space<vmem>>, vector<16x128xf32>
    tpu.vector_store %arg8[%c0_18, %c0_19], %23 {strides = array<i32>} : memref<16x128xf32, #tpu.memory_space<vmem>>, vector<16x128xf32>,
    return
  }
  func.func @transform_0(%arg0: i32) -> (i32, i32) {
    %c0_i32 = arith.constant 0 : i32
    %c0_i32_0 = arith.constant 0 : i32
    return %arg0, %c0_i32 : i32, i32
  }
  func.func @transform_1(%arg0: i32) -> (i32, i32) {
    %c0_i32 = arith.constant 0 : i32
    %c0_i32_0 = arith.constant 0 : i32
    %c0_i32_1 = arith.constant 0 : i32
    return %c0_i32, %c0_i32_0 : i32, i32
  }
  func.func @transform_2(%arg0: i32) -> (i32, i32) {
    %c0_i32 = arith.constant 0 : i32
    %c0_i32_0 = arith.constant 0 : i32
    %c0_i32_1 = arith.constant 0 : i32
    return %c0_i32, %c0_i32_0 : i32, i32
  }
  func.func @transform_3(%arg0: i32) -> (i32, i32) {
    %c0_i32 = arith.constant 0 : i32
    %c0_i32_0 = arith.constant 0 : i32
    %c0_i32_1 = arith.constant 0 : i32
    return %c0_i32, %c0_i32_0 : i32, i32
  }
  func.func @transform_4(%arg0: i32) -> (i32, i32) {
    %c0_i32 = arith.constant 0 : i32
    %c0_i32_0 = arith.constant 0 : i32
    %c0_i32_1 = arith.constant 0 : i32
    return %c0_i32, %c0_i32_0 : i32, i32
  }
  func.func @transform_5(%arg0: i32) -> (i32, i32) {
    %c0_i32 = arith.constant 0 : i32
    %c0_i32_0 = arith.constant 0 : i32
    %c0_i32_1 = arith.constant 0 : i32
    return %c0_i32, %c0_i32_0 : i32, i32
  }
  func.func @transform_6(%arg0: i32) -> (i32, i32) {
    %c0_i32 = arith.constant 0 : i32
    %c0_i32_0 = arith.constant 0 : i32
    %c0_i32_1 = arith.constant 0 : i32
    return %c0_i32, %c0_i32_0 : i32, i32
  }
  func.func @transform_7(%arg0: i32) -> (i32, i32) {
    %c0_i32 = arith.constant 0 : i32
    %c0_i32_0 = arith.constant 0 : i32
    return %arg0, %c0_i32 : i32, i32
  }
}

</mosaic_0001>

<llo_original>
// kernel: tpu_custom_call.1
$region0: #{tpu_custom_call.1}
  #allocation0 [shape = 'u32[]', space=smem, size = 0x4, offset = 0x4, fixed_abs, tag = 'smem constant byte address 0x4 - core index']
  #allocation1 [shape = 'u32[72,128]{1,0:T(1,128)}', space=vmem, size = 0x9000, scoped, tag = 'internal scratch']
  %s0 = inlined_call_operand.vmem [shape: bf16[16,64], index: 0, kind: input, shape index: {}]
  %s1 = inlined_call_operand.vmem [shape: bf16[64,128], index: 1, kind: input, shape index: {}]
  %s2 = inlined_call_operand.vmem [shape: f32[1,128], index: 2, kind: input, shape index: {}]
  %s3 = inlined_call_operand.vmem [shape: bf16[128,64], index: 3, kind: input, shape index: {}]
  %s4 = inlined_call_operand.vmem [shape: f32[1,64], index: 4, kind: input, shape index: {}]
  %s5 = inlined_call_operand.vmem [shape: bf16[64,128], index: 5, kind: input, shape index: {}]
  %s6 = inlined_call_operand.vmem [shape: f32[1,128], index: 6, kind: input, shape index: {}]
  %s7 = inlined_call_operand.hbm [shape: f32[16,128], index: 7, kind: output, shape index: {}]
  %s8 = sld [smem:[#allocation0]]
  $region38: #{tpu_custom_call.1} parent=0
    _
  %s10 = ssub.s32 1, %s8
  %s11 = scalar_select 0, %s10, %s8
  $region1: #{tpu_custom_call.1} parent=0
    #allocation2 [shape = 'u8[8192]{0}', space=vmem, size = 0x2000, scoped, tag = 'output window, operand 0, single buffered']
    #allocation3 [shape = 's32[1]{0}', space=sflag, size = 0x4, scoped, tag = 'scoped memory for tpu_custom_call.1']
    %12 = vsyncpa [#allocation3], 0
    // Predicated region
    $region2: #{tpu_custom_call.1} parent=1 // pred_check
      _
    $region3: #{tpu_custom_call.1} parent=1 // pred_check_branch
      %14 = sbr.rel (0) target = $region5
    $region4: #{tpu_custom_call.1} parent=1 // pred_region
      _
    $region5: #{tpu_custom_call.1} parent=1 // pred_fallthru
      _
    // Predicated region
    $region6: #{tpu_custom_call.1} parent=1 // pred_check
      _
    $region7: #{tpu_custom_call.1} parent=1 // pred_check_branch
      %16 = sbr.rel (0) target = $region9
    $region8: #{tpu_custom_call.1} parent=1 // pred_region
      _
    $region9: #{tpu_custom_call.1} parent=1 // pred_fallthru
      _
    // Predicated region
    $region10: #{tpu_custom_call.1} parent=1 // pred_check
      _
    $region11: #{tpu_custom_call.1} parent=1 // pred_check_branch
      %18 = sbr.rel (0) target = $region13
    $region12: #{tpu_custom_call.1} parent=1 // pred_region
      _
    $region13: #{tpu_custom_call.1} parent=1 // pred_fallthru
      _
    // Predicated region
    $region14: #{tpu_custom_call.1} parent=1 // pred_check
      _
    $region15: #{tpu_custom_call.1} parent=1 // pred_check_branch
      %20 = sbr.rel (0) target = $region17
    $region16: #{tpu_custom_call.1} parent=1 // pred_region
      _
    $region17: #{tpu_custom_call.1} parent=1 // pred_fallthru
      _
    // Predicated region
    $region18: #{tpu_custom_call.1} parent=1 // pred_check
      _
    $region19: #{tpu_custom_call.1} parent=1 // pred_check_branch
      %22 = sbr.rel (0) target = $region21
    $region20: #{tpu_custom_call.1} parent=1 // pred_region
      _
    $region21: #{tpu_custom_call.1} parent=1 // pred_fallthru
      _
    // Predicated region
    $region22: #{tpu_custom_call.1} parent=1 // pred_check
      _
    $region23: #{tpu_custom_call.1} parent=1 // pred_check_branch
      %24 = sbr.rel (0) target = $region25
    $region24: #{tpu_custom_call.1} parent=1 // pred_region
      _
    $region25: #{tpu_custom_call.1} parent=1 // pred_fallthru
      _
    // Predicated region
    $region26: #{tpu_custom_call.1} parent=1 // pred_check
      _
    $region27: #{tpu_custom_call.1} parent=1 // pred_check_branch
      %26 = sbr.rel (0) target = $region29
    $region28: #{tpu_custom_call.1} parent=1 // pred_region
      _
    $region29: #{tpu_custom_call.1} parent=1 // pred_fallthru
      _
    %v28 = vld [vmem:[%s0] sm:$0xf]
    %v29 = vld [vmem:[%s0 + $0x4] sm:$0xf]
    %v30 = vld [vmem:[%s1] sm:$0xf]
    %v31 = vld [vmem:[%s1 + $0x4] sm:$0xf]
    %v32 = vld [vmem:[%s1 + $0x8] sm:$0xf]
    %v33 = vld [vmem:[%s1 + $0xc] sm:$0xf]
    %v34 = vld [vmem:[%s1 + $0x10] sm:$0xf]
    %v35 = vld [vmem:[%s1 + $0x14] sm:$0xf]
    %v36 = vld [vmem:[%s1 + $0x18] sm:$0xf]
    %v37 = vld [vmem:[%s1 + $0x1c] sm:$0xf]
    %v38 = vld [vmem:[%s2] sm:$0x1]
    %v40 = vperm.slane %v38, 0
    %v44 = vunpack.c.l.b16 %v28
    %v45 = vunpack.c.l.b16 %v29
    %v46 = vpack.c.b16 %v45, %v44
    %v55 = vunpack.c.l.b16 %v30
    %v56 = vunpack.c.l.b16 %v31
    %v57 = vunpack.c.l.b16 %v32
    %v58 = vunpack.c.l.b16 %v33
    %v59 = vunpack.c.l.b16 %v34
    %v60 = vunpack.c.l.b16 %v35
    %v61 = vunpack.c.l.b16 %v36
    %v62 = vunpack.c.l.b16 %v37
    %v63 = vpack.c.b16 %v56, %v55
    %v64 = vpack.c.b16 %v58, %v57
    %v65 = vpack.c.b16 %v60, %v59
    %v66 = vpack.c.b16 %v62, %v61
    %vm71 = vcmask 523264
    %v73 = vsel %vm71, %v46, 0
    %75 = vmatpush.bf16.msra.mxu0 0
    %76 = vmatpush.bf16.msra.mxu0 0
    %77 = vmatpush.bf16.msra.mxu0 0
    %78 = vmatpush.bf16.msra.mxu0 0
    %79 = vmatpush.bf16.msra.mxu0 %v66
    %80 = vmatpush.bf16.msra.mxu0 %v65
    %81 = vmatpush.bf16.msra.mxu0 %v64
    %82 = vmatpush.bf16.msra.mxu0 %v63
    %83 = vmatmul.bf16.gmra.mxu0 %v73
    %v84 = vpop.f32.mrf.mxu0
    %v85 = vadd.f32 %v40, %v84
    %v86 = vpop.f32.mrf.mxu0
    %v87 = vadd.f32 %v40, %v86
    %88 = vdwg.mxu0
    %v89 = vmax.f32 %v85, 0.0
    %v90 = vmax.f32 %v87, 0.0
    %v91 = vpack.c.bf16 %v90, %v89
    %v92 = vld [vmem:[%s3] sm:$0xf]
    %v93 = vld [vmem:[%s3 + $0x4] sm:$0xf]
    %v94 = vld [vmem:[%s3 + $0x8] sm:$0xf]
    %v95 = vld [vmem:[%s3 + $0xc] sm:$0xf]
    %v96 = vld [vmem:[%s3 + $0x10] sm:$0xf]
    %v97 = vld [vmem:[%s3 + $0x14] sm:$0xf]
    %v98 = vld [vmem:[%s3 + $0x18] sm:$0xf]
    %v99 = vld [vmem:[%s3 + $0x1c] sm:$0xf]
    %v100 = vld [vmem:[%s3 + $0x20] sm:$0xf]
    %v101 = vld [vmem:[%s3 + $0x24] sm:$0xf]
    %v102 = vld [vmem:[%s3 + $0x28] sm:$0xf]
    %v103 = vld [vmem:[%s3 + $0x2c] sm:$0xf]
    %v104 = vld [vmem:[%s3 + $0x30] sm:$0xf]
    %v105 = vld [vmem:[%s3 + $0x34] sm:$0xf]
    %v106 = vld [vmem:[%s3 + $0x38] sm:$0xf]
    %v107 = vld [vmem:[%s3 + $0x3c] sm:$0xf]
    %v108 = vld [vmem:[%s4] sm:$0x1]
    %v110 = vperm.slane %v108, 0
    %v128 = vunpack.c.l.b16 %v92
    %v129 = vunpack.c.l.b16 %v93
    %v130 = vunpack.c.l.b16 %v94
    %v131 = vunpack.c.l.b16 %v95
    %v132 = vunpack.c.l.b16 %v96
    %v133 = vunpack.c.l.b16 %v97
    %v134 = vunpack.c.l.b16 %v98
    %v135 = vunpack.c.l.b16 %v99
    %v136 = vunpack.c.l.b16 %v100
    %v137 = vunpack.c.l.b16 %v101
    %v138 = vunpack.c.l.b16 %v102
    %v139 = vunpack.c.l.b16 %v103
    %v140 = vunpack.c.l.b16 %v104
    %v141 = vunpack.c.l.b16 %v105
    %v142 = vunpack.c.l.b16 %v106
    %v143 = vunpack.c.l.b16 %v107
    %v144 = vpack.c.b16 %v129, %v128
    %v145 = vpack.c.b16 %v131, %v130
    %v146 = vpack.c.b16 %v133, %v132
    %v147 = vpack.c.b16 %v135, %v134
    %v148 = vpack.c.b16 %v137, %v136
    %v149 = vpack.c.b16 %v139, %v138
    %v150 = vpack.c.b16 %v141, %v140
    %v151 = vpack.c.b16 %v143, %v142
    %160 = vmatpush.bf16.msra.mxu0 %v151
    %161 = vmatpush.bf16.msra.mxu0 %v150
    %162 = vmatpush.bf16.msra.mxu0 %v149
    %163 = vmatpush.bf16.msra.mxu0 %v148
    %164 = vmatpush.bf16.msra.mxu0 %v147
    %165 = vmatpush.bf16.msra.mxu0 %v146
    %166 = vmatpush.bf16.msra.mxu0 %v145
    %167 = vmatpush.bf16.msra.mxu0 %v144
    %168 = vmatmul.bf16.gmra.mxu0 %v91
    %v169 = vpop.f32.mrf.mxu0
    %v170 = vadd.f32 %v110, %v169
    %v171 = vpop.f32.mrf.mxu0
    %v172 = vadd.f32 %v110, %v171
    %173 = vdwg.mxu0
    %v174 = vmax.f32 %v170, 0.0
    %v175 = vmax.f32 %v172, 0.0
    %v176 = vpack.c.bf16 %v175, %v174
    %v177 = vld [vmem:[%s5] sm:$0xf]
    %v178 = vld [vmem:[%s5 + $0x4] sm:$0xf]
    %v179 = vld [vmem:[%s5 + $0x8] sm:$0xf]
    %v180 = vld [vmem:[%s5 + $0xc] sm:$0xf]
    %v181 = vld [vmem:[%s5 + $0x10] sm:$0xf]
    %v182 = vld [vmem:[%s5 + $0x14] sm:$0xf]
    %v183 = vld [vmem:[%s5 + $0x18] sm:$0xf]
    %v184 = vld [vmem:[%s5 + $0x1c] sm:$0xf]
    %v185 = vld [vmem:[%s6] sm:$0x1]
    %v187 = vperm.slane %v185, 0
    %v197 = vunpack.c.l.b16 %v177
    %v198 = vunpack.c.l.b16 %v178
    %v199 = vunpack.c.l.b16 %v179
    %v200 = vunpack.c.l.b16 %v180
    %v201 = vunpack.c.l.b16 %v181
    %v202 = vunpack.c.l.b16 %v182
    %v203 = vunpack.c.l.b16 %v183
    %v204 = vunpack.c.l.b16 %v184
    %v205 = vpack.c.b16 %v198, %v197
    %v206 = vpack.c.b16 %v200, %v199
    %v207 = vpack.c.b16 %v202, %v201
    %v208 = vpack.c.b16 %v204, %v203
    %v214 = vsel %vm71, %v176, 0
    %216 = vmatpush.bf16.msra.mxu0 0
    %217 = vmatpush.bf16.msra.mxu0 0
    %218 = vmatpush.bf16.msra.mxu0 0
    %219 = vmatpush.bf16.msra.mxu0 0
    %220 = vmatpush.bf16.msra.mxu0 %v208
    %221 = vmatpush.bf16.msra.mxu0 %v207
    %222 = vmatpush.bf16.msra.mxu0 %v206
    %223 = vmatpush.bf16.msra.mxu0 %v205
    %224 = vmatmul.bf16.gmra.mxu0 %v214
    %v225 = vpop.f32.mrf.mxu0
    %v226 = vadd.f32 %v187, %v225
    %v227 = vpop.f32.mrf.mxu0
    %v228 = vadd.f32 %v187, %v227
    %229 = vdwg.mxu0
    %v230 = vmax.f32 %v226, 0.0
    %v231 = vmax.f32 %v228, 0.0
    %232 = vst [vmem:[#allocation2] sm:$0xff] %v230
    %233 = vst [vmem:[#allocation2 + $0x8] sm:$0xff] %v231
    // Predicated region
    $region30: #{tpu_custom_call.1} parent=1 // pred_check
      _
    $region31: #{tpu_custom_call.1} parent=1 // pred_check_branch
      %235 = sbr.rel (0) target = $region33
    $region32: #{tpu_custom_call.1} parent=1 // pred_region
      %237 = vsyncadd [#allocation3], 0
      %s238 = sshll.u32 [#allocation2], 4
      %s239 = int_to_ptr.vmem [resolvable:$true] %s238
      %s240 = sshll.u32 %s7, 4
      %s241 = int_to_ptr.hbm [resolvable:$true] %s240
      %246 = dma.vmem_to_hbm [thread:$0]  %s239, 256, %s241, [#allocation3], 128, 128, 8
    $region33: #{tpu_custom_call.1} parent=1 // pred_fallthru
      _
    // Predicated region
    $region34: #{tpu_custom_call.1} parent=1 // pred_check
      _
    $region35: #{tpu_custom_call.1} parent=1 // pred_check_branch
      %248 = sbr.rel (0) target = $region37
    $region36: #{tpu_custom_call.1} parent=1 // pred_region
      %250 = dma.done [#allocation3], 256
    $region37: #{tpu_custom_call.1} parent=1 // pred_fallthru
      _
    %251 = vsyncpa [#allocation3], 1

</llo_original>
